<compile_context>
chip_gen: v7x
topology: tpu7x:2x2x1
jax: 0.10.0
libtpu: 0.0.40
codegen_flags: <defaults>
</compile_context>

<pallas_src>
import functools

import jax
import jax.numpy as jnp
from jax import lax
from jax.experimental import pallas as pl
from jax.experimental.pallas import tpu as pltpu


def _round_up(a, m):
    return (a + m - 1) // m * m


# --------------------------------------------------------------------------- #
# Kernel 1: per-edge messages
#   msg[e, :] = sum_b coeff[e, b] * (xsrc[e, :] @ basis[b])
# with coeff[e, b] = att[type(e), b] * edge_norm[e] / deg[dst(e)]
# basis is passed stacked on the lane axis: (Dp, B*Dp).
# --------------------------------------------------------------------------- #
def _msg_kernel(coeff_ref,    # VMEM (TILE_E, B)      f32
                xsrc_ref,     # VMEM (TILE_E, Dp)     bf16
                basis_ref,    # VMEM (Dp, B*Dp)       bf16
                msg_ref,      # VMEM (TILE_E, Dp)     bf16 (out)
                *, num_bases: int, d_pad: int):
    xb = jnp.dot(xsrc_ref[...], basis_ref[...],
                 preferred_element_type=jnp.float32)        # (TILE_E, B*Dp)
    coeff = coeff_ref[...]
    acc = coeff[:, 0:1] * xb[:, 0:d_pad]
    for b in range(1, num_bases):                           # static, B is small
        acc += coeff[:, b:b + 1] * xb[:, b * d_pad:(b + 1) * d_pad]
    msg_ref[...] = acc.astype(msg_ref.dtype)


# --------------------------------------------------------------------------- #
# Kernel 2: scatter-mean aggregation (segment sum via per-tile one-hot matmul)
#           + root weight + bias (+ optional ReLU)
# Grid: (node tiles [parallel], edge-tile steps [arbitrary, reduction]).
# Scalar prefetch: first_tile[i], n_tiles[i] -> only the edge tiles whose
# (sorted) destinations fall in node tile i are visited.
# --------------------------------------------------------------------------- #
def _aggr_update_kernel(first_tile_ref,   # SMEM (num_n_tiles,) i32 (prefetch)
                        ntiles_ref,       # SMEM (num_n_tiles,) i32 (prefetch)
                        x_ref,            # VMEM (TILE_N, Dp)  bf16
                        root_ref,         # VMEM (Dp, Dp)      bf16
                        bias_ref,         # VMEM (1, Dp)       f32
                        dst_ref,          # VMEM (1, TILE_E)   i32
                        msg_ref,          # VMEM (TILE_E, Dp)  bf16
                        out_ref,          # VMEM (TILE_N, Dp)  f32 (out)
                        acc_ref,          # VMEM scratch (TILE_N, Dp) f32
                        *, tile_n: int, apply_relu: bool):
    i = pl.program_id(0)
    j = pl.program_id(1)

    @pl.when(j == 0)
    def _():
        acc_ref[...] = (jnp.dot(x_ref[...], root_ref[...],
                                preferred_element_type=jnp.float32)
                        + bias_ref[...])

    @pl.when(j < ntiles_ref[i])
    def _():
        tile_e = dst_ref.shape[-1]
        rows = (i * tile_n
                + lax.broadcasted_iota(jnp.int32, (tile_n, tile_e), 0))
        onehot = (dst_ref[...] == rows).astype(jnp.bfloat16)   # (TILE_N, TILE_E)
        acc_ref[...] += jnp.dot(onehot, msg_ref[...],
                                preferred_element_type=jnp.float32)

    @pl.when(j == pl.num_programs(1) - 1)
    def _():
        y = acc_ref[...]
        if apply_relu:
            y = jnp.maximum(y, 0.0)
        out_ref[...] = y.astype(out_ref.dtype)


# --------------------------------------------------------------------------- #
# One RGCNConv layer (mean aggregation + root weight + bias) on TPU.
# --------------------------------------------------------------------------- #
def rgcn_layer_pallas(x, src, dst, edge_type, edge_norm, params, apply_relu,
                      *, tile_n=256, tile_e=512):
    basis, att, root, bias = params
    N, D = x.shape
    E = src.shape[0]
    B = att.shape[1]

    # ---- tiling / padding (lane-dense: feature dim padded to 128) ----------
    d_pad = _round_up(D, 128)
    tile_e = min(_round_up(tile_e, 128), _round_up(E, 128))
    e_pad = _round_up(E, tile_e)
    tile_n = _round_up(min(tile_n, _round_up(N, 8)), 8)
    n_pad = _round_up(N, tile_n)
    num_e_tiles = e_pad // tile_e
    num_n_tiles = n_pad // tile_n

    # ---- glue: sort edges by destination (locality for the aggregation) ----
    order = jnp.argsort(dst)
    src_s = src[order].astype(jnp.int32)
    dst_s = dst[order].astype(jnp.int32)
    etype_s = edge_type[order]
    enorm_s = edge_norm[order].astype(jnp.float32)

    deg = jnp.zeros((N,), jnp.float32).at[dst].add(1.0)
    scale = enorm_s / jnp.maximum(deg, 1.0)[dst_s]                 # (E,)
    coeff = att.astype(jnp.float32)[etype_s] * scale[:, None]      # (E, B)
    xsrc = jnp.take(x, src_s, axis=0)                              # (E, D)

    xsrc_p = jnp.pad(xsrc.astype(jnp.bfloat16),
                     ((0, e_pad - E), (0, d_pad - D)))
    coeff_p = jnp.pad(coeff, ((0, e_pad - E), (0, 0)))
    basis_p = jnp.pad(basis.astype(jnp.float32),
                      ((0, 0), (0, d_pad - D), (0, d_pad - D)))
    basis_stacked = (jnp.transpose(basis_p, (1, 0, 2))
                     .reshape(d_pad, B * d_pad).astype(jnp.bfloat16))
    x_p = jnp.pad(x.astype(jnp.bfloat16), ((0, n_pad - N), (0, d_pad - D)))
    root_p = jnp.pad(root.astype(jnp.bfloat16),
                     ((0, d_pad - D), (0, d_pad - D)))
    bias_p = jnp.pad(bias.astype(jnp.float32)[None, :],
                     ((0, 0), (0, d_pad - D)))
    dst_p = jnp.pad(dst_s[None, :], ((0, 0), (0, e_pad - E)),
                    constant_values=-1)

    # ---- per-node-tile edge-tile range table (scalar prefetch) -------------
    tile_lo = jnp.arange(num_n_tiles, dtype=jnp.int32) * tile_n
    lo = jnp.searchsorted(dst_s, tile_lo, side='left').astype(jnp.int32)
    hi = jnp.searchsorted(dst_s, tile_lo + tile_n, side='left').astype(jnp.int32)
    first_tile = jnp.minimum(lo // tile_e, num_e_tiles - 1).astype(jnp.int32)
    n_tiles = jnp.where(hi > lo,
                        (hi - 1) // tile_e - lo // tile_e + 1,
                        0).astype(jnp.int32)

    # inner-grid extent: max edge tiles any node tile needs (shrinks the
    # reduction loop when shapes are concrete; worst case under tracing).
    try:
        grid_j = int(jnp.max(n_tiles))
    except Exception:                       # jitted wrapper -> tracer
        grid_j = num_e_tiles
    grid_j = min(max(grid_j, 1), num_e_tiles)

    vmem_limit = 32 * 1024 * 1024

    # ---- kernel 1: messages -------------------------------------------------
    msg_cost = pl.CostEstimate(
        flops=2 * e_pad * d_pad * B * d_pad,
        transcendentals=0,
        bytes_accessed=(e_pad * B * 4 + e_pad * d_pad * 2
                        + d_pad * B * d_pad * 2 + e_pad * d_pad * 2))
    msg = pl.pallas_call(
        functools.partial(_msg_kernel, num_bases=B, d_pad=d_pad),
        out_shape=jax.ShapeDtypeStruct((e_pad, d_pad), jnp.bfloat16),
        grid_spec=pltpu.PrefetchScalarGridSpec(
            num_scalar_prefetch=0,
            grid=(num_e_tiles,),
            in_specs=[
                pl.BlockSpec((tile_e, B), lambda e: (e, 0)),        # coeff
                pl.BlockSpec((tile_e, d_pad), lambda e: (e, 0)),    # xsrc
                pl.BlockSpec((d_pad, B * d_pad), lambda e: (0, 0)), # basis
            ],
            out_specs=pl.BlockSpec((tile_e, d_pad), lambda e: (e, 0)),
        ),
        compiler_params=pltpu.CompilerParams(
            dimension_semantics=("parallel",),
            vmem_limit_bytes=vmem_limit),
        cost_estimate=msg_cost,
    )(coeff_p, xsrc_p, basis_stacked)

    # ---- kernel 2: aggregation + root + bias (+ ReLU) -----------------------
    def _edge_block(i, j, ft, nt):
        # clamp to the last needed tile: repeated indices are not re-DMA'd
        return ft[i] + jnp.minimum(j, jnp.maximum(nt[i] - 1, 0))

    aggr_cost = pl.CostEstimate(
        flops=(2 * n_pad * d_pad * d_pad
               + 2 * num_n_tiles * grid_j * tile_n * tile_e * d_pad),
        transcendentals=0,
        bytes_accessed=(n_pad * d_pad * 2 + d_pad * d_pad * 2 + d_pad * 4
                        + num_n_tiles * grid_j * (tile_e * 4 + tile_e * d_pad * 2)
                        + n_pad * d_pad * 4))
    out = pl.pallas_call(
        functools.partial(_aggr_update_kernel, tile_n=tile_n,
                          apply_relu=apply_relu),
        out_shape=jax.ShapeDtypeStruct((n_pad, d_pad), jnp.float32),
        grid_spec=pltpu.PrefetchScalarGridSpec(
            num_scalar_prefetch=2,
            grid=(num_n_tiles, grid_j),
            in_specs=[
                pl.BlockSpec((tile_n, d_pad), lambda i, j, ft, nt: (i, 0)),  # x
                pl.BlockSpec((d_pad, d_pad), lambda i, j, ft, nt: (0, 0)),   # root
                pl.BlockSpec((1, d_pad), lambda i, j, ft, nt: (0, 0)),       # bias
                pl.BlockSpec((1, tile_e),
                             lambda i, j, ft, nt: (0, _edge_block(i, j, ft, nt))),
                pl.BlockSpec((tile_e, d_pad),
                             lambda i, j, ft, nt: (_edge_block(i, j, ft, nt), 0)),
            ],
            out_specs=pl.BlockSpec((tile_n, d_pad), lambda i, j, ft, nt: (i, 0)),
            scratch_shapes=[pltpu.VMEM((tile_n, d_pad), jnp.float32)],
        ),
        compiler_params=pltpu.CompilerParams(
            dimension_semantics=("parallel", "arbitrary"),
            vmem_limit_bytes=vmem_limit),
        cost_estimate=aggr_cost,
    )(first_tile, n_tiles, x_p, root_p, bias_p, dst_p, msg)

    return out[:N, :D]


def conve_forward_pallas(entity, edge_index, edge_type, edge_norm,
                         emb_e, params1, params2, *, tile_n=256, tile_e=512):
    """ConvE.forward: emb lookup -> RGCN -> ReLU -> dropout(identity) -> RGCN."""
    src, dst = edge_index[0], edge_index[1]
    h = jnp.take(emb_e, entity.squeeze(), axis=0)          # embedding lookup
    h = rgcn_layer_pallas(h, src, dst, edge_type, edge_norm, params1,
                          apply_relu=True, tile_n=tile_n, tile_e=tile_e)
    # TODO(synk): F.dropout in the PyTorch forward is stochastic; treated as
    # identity (inference / eval semantics) here.
    h = rgcn_layer_pallas(h, src, dst, edge_type, edge_norm, params2,
                          apply_relu=False, tile_n=tile_n, tile_e=tile_e)
    return h


# --------------------------------------------------------------------------- #
# pure-JAX f32 reference (for correctness check)
# --------------------------------------------------------------------------- #
def _rgcn_ref(x, src, dst, edge_type, edge_norm, params):
    basis, att, root, bias = params
    N, _ = x.shape
    W = jnp.einsum('rb,bde->rde', att, basis)
    msg = jnp.einsum('ed,edf->ef', x[src], W[edge_type]) * edge_norm[:, None]
    deg = jnp.zeros((N,), jnp.float32).at[dst].add(1.0)
    aggr = jnp.zeros((N, x.shape[1]), jnp.float32).at[dst].add(msg)
    aggr = aggr / jnp.maximum(deg, 1.0)[:, None]
    return aggr + x @ root + bias


def _conve_forward_ref(entity, edge_index, edge_type, edge_norm,
                       emb_e, params1, params2):
    src, dst = edge_index[0], edge_index[1]
    h = jnp.take(emb_e, entity.squeeze(), axis=0)
    h = jnp.maximum(_rgcn_ref(h, src, dst, edge_type, edge_norm, params1), 0.0)
    h = _rgcn_ref(h, src, dst, edge_type, edge_norm, params2)
    return h


# --------------------------------------------------------------------------- #
# deterministic parameter / input construction
# --------------------------------------------------------------------------- #
def _make_rgcn_params(key, in_ch, out_ch, num_relations, num_bases):
    k1, k2, k3, k4 = jax.random.split(key, 4)
    bound = 1.0 / jnp.sqrt(jnp.float32(num_bases * in_ch))   # PyG `uniform` init
    basis = jax.random.uniform(k1, (num_bases, in_ch, out_ch),
                               jnp.float32, -bound, bound)
    att = jax.random.uniform(k2, (num_relations, num_bases),
                             jnp.float32, -bound, bound)
    root = jax.random.uniform(k3, (in_ch, out_ch), jnp.float32, -bound, bound)
    bias = jax.random.uniform(k4, (out_ch,), jnp.float32, -bound, bound)
    return basis, att, root, bias


if __name__ == "__main__":
    key = jax.random.PRNGKey(0)

    num_entities = 48
    embedding_dim = 32
    num_relations = 3            # RGCN layers use num_relations * 2
    num_bases = 2
    num_edges = 300
    R2 = num_relations * 2

    k_emb, k_p1, k_p2, k_src, k_dst, k_typ, k_nrm = jax.random.split(key, 7)

    # emb_e ~ xavier_normal_
    std = jnp.sqrt(2.0 / (num_entities + embedding_dim))
    emb_e = std * jax.random.normal(k_emb, (num_entities, embedding_dim),
                                    jnp.float32)

    params1 = _make_rgcn_params(k_p1, embedding_dim, embedding_dim, R2, num_bases)
    params2 = _make_rgcn_params(k_p2, embedding_dim, embedding_dim, R2, num_bases)

    entity = jnp.arange(num_entities, dtype=jnp.int32).reshape(num_entities, 1)
    src = jax.random.randint(k_src, (num_edges,), 0, num_entities, jnp.int32)
    dst = jax.random.randint(k_dst, (num_edges,), 0, num_entities, jnp.int32)
    edge_index = jnp.stack([src, dst], axis=0)                    # (2, E)
    edge_type = jax.random.randint(k_typ, (num_edges,), 0, R2, jnp.int32)
    edge_norm = jax.random.uniform(k_nrm, (num_edges,), jnp.float32, 0.5, 1.5)

    # small tiles so the test exercises multiple node and edge tiles
    out = conve_forward_pallas(entity, edge_index, edge_type, edge_norm,
                               emb_e, params1, params2, tile_n=16, tile_e=128)
    out = jax.block_until_ready(out)

    ref = _conve_forward_ref(entity, edge_index, edge_type, edge_norm,
                             emb_e, params1, params2)
    assert out.shape == (num_entities, embedding_dim)
    # tolerance loosened vs. pure-f32 because MXU operands are bf16
    # (accumulation is f32 via preferred_element_type).
    assert jnp.allclose(out, ref, rtol=2e-2, atol=5e-3), "mismatch vs reference"

    print("KERNEL_OK")
</pallas_src>

<mosaic_0001>
module attributes {stable_mosaic.version = 11 : i64} {
  func.func @_msg_kernel(%arg0: i32, %arg1: memref<128x2xf32, #tpu.memory_space<vmem>>, %arg2: memref<128x128xbf16, #tpu.memory_space<vmem>>, %arg3: memref<128x256xbf16, #tpu.memory_space<vmem>>, %arg4: memref<128x128xbf16, #tpu.memory_space<vmem>>) attributes {dimension_semantics = [#tpu.dimension_semantics<parallel>], iteration_bounds = array<i64: 3>, scalar_prefetch = 0 : i64, scratch_operands = 0 : i64, tpu.core_type = #tpu.core_type<tc>, window_params = [{transform_indices = @transform_0, window_bounds = array<i64: 128, 2>}, {transform_indices = @transform_1, window_bounds = array<i64: 128, 128>}, {pipeline_mode = #tpu.pipeline_mode<synchronous>, transform_indices = @transform_2, window_bounds = array<i64: 128, 256>}, {transform_indices = @transform_3, window_bounds = array<i64: 128, 128>}]} {
    %c0 = arith.constant 0 : index
    %c0_0 = arith.constant 0 : index
    %0 = vector.load %arg2[%c0, %c0_0] : memref<128x128xbf16, #tpu.memory_space<vmem>>, vector<128x128xbf16>
    %c0_1 = arith.constant 0 : index
    %c0_2 = arith.constant 0 : index
    %1 = vector.load %arg3[%c0_1, %c0_2] : memref<128x256xbf16, #tpu.memory_space<vmem>>, vector<128x256xbf16>
    %cst = arith.constant dense<0.000000e+00> : vector<128x256xf32>
    %2 = tpu.matmul %0, %1, %cst {dimension_numbers = #tpu.dot_dimension_numbers<[1], [0], [0], [1], [0, 0, 1, 1], [], []>} : vector<128x128xbf16>, vector<128x256xbf16>, vector<128x256xf32> -> vector<128x256xf32>
    %c0_3 = arith.constant 0 : index
    %c0_4 = arith.constant 0 : index
    %3 = vector.load %arg1[%c0_3, %c0_4] : memref<128x2xf32, #tpu.memory_space<vmem>>, vector<128x2xf32>
    %4 = vector.extract_strided_slice %3 {offsets = [0, 0], sizes = [128, 1], strides = [1, 1]} : vector<128x2xf32> to vector<128x1xf32>
    %5 = vector.extract_strided_slice %2 {offsets = [0, 0], sizes = [128, 128], strides = [1, 1]} : vector<128x256xf32> to vector<128x128xf32>
    %6 = vector.broadcast %4 : vector<128x1xf32> to vector<128x128xf32>
    %7 = arith.mulf %6, %5 : vector<128x128xf32>
    %8 = vector.extract_strided_slice %3 {offsets = [0, 1], sizes = [128, 1], strides = [1, 1]} : vector<128x2xf32> to vector<128x1xf32>
    %9 = vector.extract_strided_slice %2 {offsets = [0, 128], sizes = [128, 128], strides = [1, 1]} : vector<128x256xf32> to vector<128x128xf32>
    %10 = vector.broadcast %8 : vector<128x1xf32> to vector<128x128xf32>
    %11 = arith.mulf %10, %9 : vector<128x128xf32>
    %12 = arith.addf %7, %11 : vector<128x128xf32>
    %13 = arith.truncf %12 : vector<128x128xf32> to vector<128x128xbf16>
    %c0_5 = arith.constant 0 : index
    %c0_6 = arith.constant 0 : index
    %14 = vector.load %arg4[%c0_5, %c0_6] : memref<128x128xbf16, #tpu.memory_space<vmem>>, vector<128x128xbf16>
    tpu.vector_store %arg4[%c0_5, %c0_6], %13 {strides = array<i32>} : memref<128x128xbf16, #tpu.memory_space<vmem>>, vector<128x128xbf16>,
    return
  }
  func.func @transform_0(%arg0: i32) -> (i32, i32) {
    %c0_i32 = arith.constant 0 : i32
    %c0_i32_0 = arith.constant 0 : i32
    return %arg0, %c0_i32 : i32, i32
  }
  func.func @transform_1(%arg0: i32) -> (i32, i32) {
    %c0_i32 = arith.constant 0 : i32
    %c0_i32_0 = arith.constant 0 : i32
    return %arg0, %c0_i32 : i32, i32
  }
  func.func @transform_2(%arg0: i32) -> (i32, i32) {
    %c0_i32 = arith.constant 0 : i32
    %c0_i32_0 = arith.constant 0 : i32
    %c0_i32_1 = arith.constant 0 : i32
    return %c0_i32, %c0_i32_0 : i32, i32
  }
  func.func @transform_3(%arg0: i32) -> (i32, i32) {
    %c0_i32 = arith.constant 0 : i32
    %c0_i32_0 = arith.constant 0 : i32
    return %arg0, %c0_i32 : i32, i32
  }
}

</mosaic_0001>

<llo_original>
// kernel: tpu_custom_call.1
$region0: #{tpu_custom_call.1}
  #allocation0 [shape = 'u32[]', space=smem, size = 0x4, offset = 0x4, fixed_abs, tag = 'smem constant byte address 0x4 - core index']
  #allocation1 [shape = 'u32[144,128]{1,0:T(1,128)}', space=vmem, size = 0x12000, scoped, tag = 'internal scratch']
  %s0 = inlined_call_operand.vmem [shape: f32[384,2], index: 0, kind: input, shape index: {}]
  %s1 = inlined_call_operand.vmem [shape: bf16[384,128], index: 1, kind: input, shape index: {}]
  %s2 = inlined_call_operand.vmem [shape: bf16[128,256], index: 2, kind: input, shape index: {}]
  %s3 = inlined_call_operand.hbm [shape: bf16[384,128], index: 3, kind: output, shape index: {}]
  %s4 = sld [smem:[#allocation0]]
  $region45: #{tpu_custom_call.1} parent=0
    _
  %s6 = ssub.s32 1, %s4
  %s7 = scalar_select 0, %s6, %s4
  $region1: #{tpu_custom_call.1} parent=0
    #allocation2 [shape = 'u8[65536]{0}', space=vmem, size = 0x10000, scoped, tag = 'output window, operand 0']
    #allocation3 [shape = 's32[2]{0}', space=sflag, size = 0x8, scoped, tag = 'scoped memory for tpu_custom_call.1']
    %8 = vsyncpa [#allocation3], 0
    %s9 = scalar_lea.sflag [#allocation3], 1
    %10 = vsyncpa %s9, 0
    loop: start=0, step=1, limit=5
    $region2: #{tpu_custom_call.1} parent=1 // loop_pre_header
      _
    $region3: #{tpu_custom_call.1} parent=1 // loop_header
      %s12 = sphi 0, %s16
      %p13 = scmp.ge.s32.totalorder %s12, 5
      %s22 = sphi 0, %s24
      %s25 = sphi 0, %s22
      %s26 = sphi 0, %s25
      %s42 = sphi 0, %s26
      %s48 = sphi 0, %s50
      %s51 = sphi 0, %s48
      %s52 = sphi 0, %s51
      %s68 = sphi 0, %s52
      %s72 = sphi 0, %s72
      %s74 = sphi 0, %s72
      %s75 = sphi 0, %s74
      %s89 = sphi 0, %s75
      %s95 = sphi 0, %s97
      %s98 = sphi 0, %s95
      %s99 = sphi 0, %s98
      %s115 = sphi 0, %s99
    $region4: #{tpu_custom_call.1} parent=1 // loop_header_branch
      %15 = sbr.rel (%p13) target = $region8
    $region5: #{tpu_custom_call.1} parent=1 // loop_body
      %s17 = ssub.s32 %s12, 1
      %s18 = ssub.s32 %s12, 2
      %s19 = sadd.s32 %s12, 1
      %s20 = ssub.s32 %s12, %s19
      %p21 = scmp.eq.s32.totalorder %s20, 0
      %s23 = sadd.s32 %s22, 1
      %s24 = scalar_select %p21, %s22, %s23
      %p27 = pneg %p21
      %p28 = scmp.eq.s32.totalorder %s12, 2
      %p29 = por %p27, %p28
      %p30 = scmp.ne.s32.totalorder %s22, %s25
      %p31 = scmp.eq.s32.totalorder %s12, 0
      %p32 = por %p30, %p31
      %p33 = scmp.ne.s32.totalorder %s22, %s25
      %p34 = scmp.eq.s32.totalorder %s17, 2
      %p35 = por %p33, %p34
      %p36 = scmp.ne.s32.totalorder %s25, %s26
      %p37 = scmp.eq.s32.totalorder %s17, 0
      %p38 = por %p36, %p37
      %p39 = scmp.ne.s32.totalorder %s25, %s26
      %p40 = scmp.eq.s32.totalorder %s18, 2
      %p41 = por %p39, %p40
      %p43 = scmp.ne.s32.totalorder %s26, %s42
      %p44 = scmp.eq.s32.totalorder %s18, 0
      %p45 = por %p43, %p44
      %s46 = ssub.s32 %s12, %s19
      %p47 = scmp.eq.s32.totalorder %s46, 0
      %s49 = sadd.s32 %s48, 1
      %s50 = scalar_select %p47, %s48, %s49
      %p53 = pneg %p47
      %p54 = scmp.eq.s32.totalorder %s12, 2
      %p55 = por %p53, %p54
      %p56 = scmp.ne.s32.totalorder %s48, %s51
      %p57 = scmp.eq.s32.totalorder %s12, 0
      %p58 = por %p56, %p57
      %p59 = scmp.ne.s32.totalorder %s48, %s51
      %p60 = scmp.eq.s32.totalorder %s17, 2
      %p61 = por %p59, %p60
      %p62 = scmp.ne.s32.totalorder %s51, %s52
      %p63 = scmp.eq.s32.totalorder %s17, 0
      %p64 = por %p62, %p63
      %p65 = scmp.ne.s32.totalorder %s51, %s52
      %p66 = scmp.eq.s32.totalorder %s18, 2
      %p67 = por %p65, %p66
      %p69 = scmp.ne.s32.totalorder %s52, %s68
      %p70 = scmp.eq.s32.totalorder %s18, 0
      %p71 = por %p69, %p70
      %s73 = sadd.s32 %s72, 1
      %p76 = scmp.eq.s32.totalorder %s12, 2
      %p77 = scmp.ne.s32.totalorder %s72, %s74
      %p78 = scmp.eq.s32.totalorder %s12, 0
      %p79 = por %p77, %p78
      %p80 = scmp.ne.s32.totalorder %s72, %s74
      %p81 = scmp.eq.s32.totalorder %s17, 2
      %p82 = por %p80, %p81
      %p83 = scmp.ne.s32.totalorder %s74, %s75
      %p84 = scmp.eq.s32.totalorder %s17, 0
      %p85 = por %p83, %p84
      %p86 = scmp.ne.s32.totalorder %s74, %s75
      %p87 = scmp.eq.s32.totalorder %s18, 2
      %p88 = por %p86, %p87
      %p90 = scmp.ne.s32.totalorder %s75, %s89
      %p91 = scmp.eq.s32.totalorder %s18, 0
      %p92 = por %p90, %p91
      %s93 = ssub.s32 %s12, %s19
      %p94 = scmp.eq.s32.totalorder %s93, 0
      %s96 = sadd.s32 %s95, 1
      %s97 = scalar_select %p94, %s95, %s96
      %p100 = pneg %p94
      %p101 = scmp.eq.s32.totalorder %s12, 2
      %p102 = por %p100, %p101
      %p103 = scmp.ne.s32.totalorder %s95, %s98
      %p104 = scmp.eq.s32.totalorder %s12, 0
      %p105 = por %p103, %p104
      %p106 = scmp.ne.s32.totalorder %s95, %s98
      %p107 = scmp.eq.s32.totalorder %s17, 2
      %p108 = por %p106, %p107
      %p109 = scmp.ne.s32.totalorder %s98, %s99
      %p110 = scmp.eq.s32.totalorder %s17, 0
      %p111 = por %p109, %p110
      %p112 = scmp.ne.s32.totalorder %s98, %s99
      %p113 = scmp.eq.s32.totalorder %s18, 2
      %p114 = por %p112, %p113
      %p116 = scmp.ne.s32.totalorder %s99, %s115
      %p117 = scmp.eq.s32.totalorder %s18, 0
      %p118 = por %p116, %p117
      %p119 = scmp.le.s32.totalorder 1, %s12
      %p120 = scmp.lt.s32.totalorder %s12, 4
      %p121 = pnand %p119, %p120
      %p122 = pneg %p121
      // Predicated region
      $region9: #{tpu_custom_call.1} parent=5 // pred_check
        _
      $region10: #{tpu_custom_call.1} parent=5 // pred_check_branch
        %124 = sbr.rel (%p121) target = $region12
      $region11: #{tpu_custom_call.1} parent=5 // pred_region
        %s125 = ssub.s32 %s12, 1
        // Predicated region
        $region13: #{tpu_custom_call.1} parent=11 // pred_check
          %p126 = pneg %p85
        $region14: #{tpu_custom_call.1} parent=11 // pred_check_branch
          %128 = sbr.rel (%p126) target = $region16
        $region15: #{tpu_custom_call.1} parent=11 // pred_region
          _
        $region16: #{tpu_custom_call.1} parent=11 // pred_fallthru
          _
      $region12: #{tpu_custom_call.1} parent=5 // pred_fallthru
        _
      %p129 = scmp.lt.s32.totalorder %s12, 3
      // Predicated region
      $region17: #{tpu_custom_call.1} parent=5 // pred_check
        %p130 = pneg %p129
      $region18: #{tpu_custom_call.1} parent=5 // pred_check_branch
        %132 = sbr.rel (%p130) target = $region20
      $region19: #{tpu_custom_call.1} parent=5 // pred_region
        // Predicated region
        $region21: #{tpu_custom_call.1} parent=19 // pred_check
          %p133 = pneg %p32
        $region22: #{tpu_custom_call.1} parent=19 // pred_check_branch
          %135 = sbr.rel (%p133) target = $region24
        $region23: #{tpu_custom_call.1} parent=19 // pred_region
          %s136 = smul.u32 16, %s12
          %p137 = scmp.lt.s32.totalorder %s136, 47
          %s138 = scalar_select %p137, %s136, 47
          %s139 = smul.addr %s138, 8
          %s140 = scalar_lea.vmem %s0, %s139
          %s141 = smul.u32 16, %s12
        $region24: #{tpu_custom_call.1} parent=19 // pred_fallthru
          _
        // Predicated region
        $region25: #{tpu_custom_call.1} parent=19 // pred_check
          %p142 = pneg %p58
        $region26: #{tpu_custom_call.1} parent=19 // pred_check_branch
          %144 = sbr.rel (%p142) target = $region28
        $region27: #{tpu_custom_call.1} parent=19 // pred_region
          %s145 = smul.u32 16, %s12
          %p146 = scmp.lt.s32.totalorder %s145, 47
          %s147 = scalar_select %p146, %s145, 47
          %s148 = smul.addr %s147, 4
          %s149 = scalar_lea.vmem %s1, %s148
          %s150 = smul.u32 16, %s12
        $region28: #{tpu_custom_call.1} parent=19 // pred_fallthru
          _
      $region20: #{tpu_custom_call.1} parent=5 // pred_fallthru
        _
      %p151 = scmp.le.s32.totalorder 1, %s12
      %p152 = scmp.lt.s32.totalorder %s12, 4
      %p153 = pnand %p151, %p152
      %p154 = pneg %p153
      // Predicated region
      $region29: #{tpu_custom_call.1} parent=5 // pred_check
        _
      $region30: #{tpu_custom_call.1} parent=5 // pred_check_branch
        %156 = sbr.rel (%p153) target = $region32
      $region31: #{tpu_custom_call.1} parent=5 // pred_region
        %s157 = ssub.s32 %s12, 1
        %s158 = smul.u32 16, %s17
        %p159 = scmp.lt.s32.totalorder %s158, 47
        %s160 = scalar_select %p159, %s158, 47
        %s161 = smul.addr %s160, 8
        %s162 = scalar_lea.vmem %s0, %s161
        %p163 = pneg %p38
        %p164 = pneg %p35
        %s165 = smul.u32 16, %s17
        %p166 = scmp.lt.s32.totalorder %s165, 47
        %s167 = scalar_select %p166, %s165, 47
        %s168 = smul.addr %s167, 4
        %s169 = scalar_lea.vmem %s1, %s168
        %p170 = pneg %p64
        %p171 = pneg %p61
        %p172 = pneg %p85
        %p173 = pneg %p82
        %p174 = pneg %p111
        %p175 = pneg %p108
        %s176 = sand.u32 %s98, 1
        %s177 = scalar_lea.sflag [#allocation3], %s176
        %s178 = sand.u32 %s98, 1
        %s179 = smul.addr %s178, 64
        %s180 = scalar_lea.vmem [#allocation2], %s179
        %s181 = smul.u32 16, %s17
        %p182 = scmp.lt.s32.totalorder %s181, 47
        %s183 = scalar_select %p182, %s181, 47
        %s184 = smul.addr %s183, 8
        %s185 = scalar_lea.vmem %s0, %s184
        %s186 = smul.u32 16, %s17
        %s187 = smul.u32 16, %s17
        %p188 = scmp.lt.s32.totalorder %s187, 47
        %s189 = scalar_select %p188, %s187, 47
        %s190 = smul.addr %s189, 4
        %s191 = scalar_lea.vmem %s1, %s190
        %s192 = smul.u32 16, %s17
        %s193 = smul.u32 16, %s17
        %v195 = vld [vmem:[%s191] sm:$0xf]
        %v196 = vld [vmem:[%s191 + $0x4] sm:$0xf]
        %v197 = vld [vmem:[%s191 + $0x8] sm:$0xf]
        %v198 = vld [vmem:[%s191 + $0xc] sm:$0xf]
        %v199 = vld [vmem:[%s191 + $0x10] sm:$0xf]
        %v200 = vld [vmem:[%s191 + $0x14] sm:$0xf]
        %v201 = vld [vmem:[%s191 + $0x18] sm:$0xf]
        %v202 = vld [vmem:[%s191 + $0x1c] sm:$0xf]
        %v203 = vld [vmem:[%s191 + $0x20] sm:$0xf]
        %v204 = vld [vmem:[%s191 + $0x24] sm:$0xf]
        %v205 = vld [vmem:[%s191 + $0x28] sm:$0xf]
        %v206 = vld [vmem:[%s191 + $0x2c] sm:$0xf]
        %v207 = vld [vmem:[%s191 + $0x30] sm:$0xf]
        %v208 = vld [vmem:[%s191 + $0x34] sm:$0xf]
        %v209 = vld [vmem:[%s191 + $0x38] sm:$0xf]
        %v210 = vld [vmem:[%s191 + $0x3c] sm:$0xf]
        %v211 = vld [vmem:[%s2] sm:$0xff]
        %v212 = vld [vmem:[%s2 + $0x8] sm:$0xff]
        %v213 = vld [vmem:[%s2 + $0x10] sm:$0xff]
        %v214 = vld [vmem:[%s2 + $0x18] sm:$0xff]
        %v215 = vld [vmem:[%s2 + $0x20] sm:$0xff]
        %v216 = vld [vmem:[%s2 + $0x28] sm:$0xff]
        %v217 = vld [vmem:[%s2 + $0x30] sm:$0xff]
        %v218 = vld [vmem:[%s2 + $0x38] sm:$0xff]
        %v219 = vld [vmem:[%s2 + $0x40] sm:$0xff]
        %v220 = vld [vmem:[%s2 + $0x48] sm:$0xff]
        %v221 = vld [vmem:[%s2 + $0x50] sm:$0xff]
        %v222 = vld [vmem:[%s2 + $0x58] sm:$0xff]
        %v223 = vld [vmem:[%s2 + $0x60] sm:$0xff]
        %v224 = vld [vmem:[%s2 + $0x68] sm:$0xff]
        %v225 = vld [vmem:[%s2 + $0x70] sm:$0xff]
        %v226 = vld [vmem:[%s2 + $0x78] sm:$0xff]
        %v243 = vunpack.c.l.b16 %v195
        %v244 = vunpack.c.l.b16 %v196
        %v245 = vunpack.c.l.b16 %v197
        %v246 = vunpack.c.l.b16 %v198
        %v247 = vunpack.c.l.b16 %v199
        %v248 = vunpack.c.l.b16 %v200
        %v249 = vunpack.c.l.b16 %v201
        %v250 = vunpack.c.l.b16 %v202
        %v251 = vunpack.c.l.b16 %v203
        %v252 = vunpack.c.l.b16 %v204
        %v253 = vunpack.c.l.b16 %v205
        %v254 = vunpack.c.l.b16 %v206
        %v255 = vunpack.c.l.b16 %v207
        %v256 = vunpack.c.l.b16 %v208
        %v257 = vunpack.c.l.b16 %v209
        %v258 = vunpack.c.l.b16 %v210
        %v259 = vpack.c.b16 %v244, %v243
        %v260 = vpack.c.b16 %v246, %v245
        %v261 = vpack.c.b16 %v248, %v247
        %v262 = vpack.c.b16 %v250, %v249
        %v263 = vpack.c.b16 %v252, %v251
        %v264 = vpack.c.b16 %v254, %v253
        %v265 = vpack.c.b16 %v256, %v255
        %v266 = vpack.c.b16 %v258, %v257
        %v291 = vunpack.c.l.b16 %v211
        %v292 = vunpack.c.h.b16 %v211
        %v293 = vunpack.c.l.b16 %v212
        %v294 = vunpack.c.h.b16 %v212
        %v295 = vunpack.c.l.b16 %v213
        %v296 = vunpack.c.h.b16 %v213
        %v297 = vunpack.c.l.b16 %v214
        %v298 = vunpack.c.h.b16 %v214
        %v299 = vunpack.c.l.b16 %v215
        %v300 = vunpack.c.h.b16 %v215
        %v301 = vunpack.c.l.b16 %v216
        %v302 = vunpack.c.h.b16 %v216
        %v303 = vunpack.c.l.b16 %v217
        %v304 = vunpack.c.h.b16 %v217
        %v305 = vunpack.c.l.b16 %v218
        %v306 = vunpack.c.h.b16 %v218
        %v307 = vunpack.c.l.b16 %v219
        %v308 = vunpack.c.h.b16 %v219
        %v309 = vunpack.c.l.b16 %v220
        %v310 = vunpack.c.h.b16 %v220
        %v311 = vunpack.c.l.b16 %v221
        %v312 = vunpack.c.h.b16 %v221
        %v313 = vunpack.c.l.b16 %v222
        %v314 = vunpack.c.h.b16 %v222
        %v315 = vunpack.c.l.b16 %v223
        %v316 = vunpack.c.h.b16 %v223
        %v317 = vunpack.c.l.b16 %v224
        %v318 = vunpack.c.h.b16 %v224
        %v319 = vunpack.c.l.b16 %v225
        %v320 = vunpack.c.h.b16 %v225
        %v321 = vunpack.c.l.b16 %v226
        %v322 = vunpack.c.h.b16 %v226
        %v323 = vpack.c.b16 %v293, %v291
        %v324 = vpack.c.b16 %v294, %v292
        %v325 = vpack.c.b16 %v297, %v295
        %v326 = vpack.c.b16 %v298, %v296
        %v327 = vpack.c.b16 %v301, %v299
        %v328 = vpack.c.b16 %v302, %v300
        %v329 = vpack.c.b16 %v305, %v303
        %v330 = vpack.c.b16 %v306, %v304
        %v331 = vpack.c.b16 %v309, %v307
        %v332 = vpack.c.b16 %v310, %v308
        %v333 = vpack.c.b16 %v313, %v311
        %v334 = vpack.c.b16 %v314, %v312
        %v335 = vpack.c.b16 %v317, %v315
        %v336 = vpack.c.b16 %v318, %v316
        %v337 = vpack.c.b16 %v321, %v319
        %v338 = vpack.c.b16 %v322, %v320
        %355 = vmatprep.subr.bf16.mxu0 %v324
        %356 = vmatpush1.bf16.msra.mxu0 %v323
        %357 = vmatprep.subr.bf16.mxu0 %v326
        %358 = vmatpush1.bf16.msra.mxu0 %v325
        %359 = vmatprep.subr.bf16.mxu0 %v328
        %360 = vmatpush1.bf16.msra.mxu0 %v327
        %361 = vmatprep.subr.bf16.mxu0 %v330
        %362 = vmatpush1.bf16.msra.mxu0 %v329
        %363 = vmatprep.subr.bf16.mxu0 %v332
        %364 = vmatpush1.bf16.msra.mxu0 %v331
        %365 = vmatprep.subr.bf16.mxu0 %v334
        %366 = vmatpush1.bf16.msra.mxu0 %v333
        %367 = vmatprep.subr.bf16.mxu0 %v336
        %368 = vmatpush1.bf16.msra.mxu0 %v335
        %369 = vmatprep.subr.bf16.mxu0 %v338
        %370 = vmatpush1.bf16.msra.mxu0 %v337
        %371 = vmatprep.subr.bf16.mxu0 0
        %372 = vmatpush1.bf16.msra.mxu0 0
        %373 = vmatprep.subr.bf16.mxu0 0
        %374 = vmatpush1.bf16.msra.mxu0 0
        %375 = vmatprep.subr.bf16.mxu0 0
        %376 = vmatpush1.bf16.msra.mxu0 0
        %377 = vmatprep.subr.bf16.mxu0 0
        %378 = vmatpush1.bf16.msra.mxu0 0
        %379 = vmatprep.subr.bf16.mxu0 0
        %380 = vmatpush1.bf16.msra.mxu0 0
        %381 = vmatprep.subr.bf16.mxu0 0
        %382 = vmatpush1.bf16.msra.mxu0 0
        %383 = vmatprep.subr.bf16.mxu0 0
        %384 = vmatpush1.bf16.msra.mxu0 0
        %385 = vmatprep.subr.bf16.mxu0 0
        %386 = vmatpush1.bf16.msra.mxu0 0
        %387 = vmatprep.mubr.bf16.mxu0 0
        %388 = vmatmul.mubr.bf16.gmra.mrb[0].mxu0 %v259
        %v389 = vpop.f32.mrb[0].mxu0
        %v390 = vadd.f32 0.0, %v389
        %v391 = vpop.f32.mrb[0].mxu0
        %v392 = vadd.f32 0.0, %v391
        %v393 = vpop.f32.mrb[0].mxu0
        %v394 = vadd.f32 0.0, %v393
        %v395 = vpop.f32.mrb[0].mxu0
        %v396 = vadd.f32 0.0, %v395
        %397 = vmatprep.mubr.bf16.mxu0 0
        %398 = vmatmul.mubr.bf16.gmra.mrb[0].mxu0 %v260
        %v399 = vpop.f32.mrb[0].mxu0
        %v400 = vadd.f32 0.0, %v399
        %v401 = vpop.f32.mrb[0].mxu0
        %v402 = vadd.f32 0.0, %v401
        %v403 = vpop.f32.mrb[0].mxu0
        %v404 = vadd.f32 0.0, %v403
        %v405 = vpop.f32.mrb[0].mxu0
        %v406 = vadd.f32 0.0, %v405
        %407 = vmatprep.mubr.bf16.mxu0 0
        %408 = vmatmul.mubr.bf16.gmra.mrb[0].mxu0 %v261
        %v409 = vpop.f32.mrb[0].mxu0
        %v410 = vadd.f32 0.0, %v409
        %v411 = vpop.f32.mrb[0].mxu0
        %v412 = vadd.f32 0.0, %v411
        %v413 = vpop.f32.mrb[0].mxu0
        %v414 = vadd.f32 0.0, %v413
        %v415 = vpop.f32.mrb[0].mxu0
        %v416 = vadd.f32 0.0, %v415
        %417 = vmatprep.mubr.bf16.mxu0 0
        %418 = vmatmul.mubr.bf16.gmra.mrb[0].mxu0 %v262
        %v419 = vpop.f32.mrb[0].mxu0
        %v420 = vadd.f32 0.0, %v419
        %v421 = vpop.f32.mrb[0].mxu0
        %v422 = vadd.f32 0.0, %v421
        %v423 = vpop.f32.mrb[0].mxu0
        %v424 = vadd.f32 0.0, %v423
        %v425 = vpop.f32.mrb[0].mxu0
        %v426 = vadd.f32 0.0, %v425
        %427 = vmatprep.mubr.bf16.mxu0 0
        %428 = vmatmul.mubr.bf16.gmra.mrb[0].mxu0 %v263
        %v429 = vpop.f32.mrb[0].mxu0
        %v430 = vadd.f32 0.0, %v429
        %v431 = vpop.f32.mrb[0].mxu0
        %v432 = vadd.f32 0.0, %v431
        %v433 = vpop.f32.mrb[0].mxu0
        %v434 = vadd.f32 0.0, %v433
        %v435 = vpop.f32.mrb[0].mxu0
        %v436 = vadd.f32 0.0, %v435
        %437 = vmatprep.mubr.bf16.mxu0 0
        %438 = vmatmul.mubr.bf16.gmra.mrb[0].mxu0 %v264
        %v439 = vpop.f32.mrb[0].mxu0
        %v440 = vadd.f32 0.0, %v439
        %v441 = vpop.f32.mrb[0].mxu0
        %v442 = vadd.f32 0.0, %v441
        %v443 = vpop.f32.mrb[0].mxu0
        %v444 = vadd.f32 0.0, %v443
        %v445 = vpop.f32.mrb[0].mxu0
        %v446 = vadd.f32 0.0, %v445
        %447 = vmatprep.mubr.bf16.mxu0 0
        %448 = vmatmul.mubr.bf16.gmra.mrb[0].mxu0 %v265
        %v449 = vpop.f32.mrb[0].mxu0
        %v450 = vadd.f32 0.0, %v449
        %v451 = vpop.f32.mrb[0].mxu0
        %v452 = vadd.f32 0.0, %v451
        %v453 = vpop.f32.mrb[0].mxu0
        %v454 = vadd.f32 0.0, %v453
        %v455 = vpop.f32.mrb[0].mxu0
        %v456 = vadd.f32 0.0, %v455
        %457 = vmatprep.mubr.bf16.mxu0 0
        %458 = vmatmul.mubr.bf16.gmra.mrb[0].mxu0 %v266
        %v459 = vpop.f32.mrb[0].mxu0
        %v460 = vadd.f32 0.0, %v459
        %v461 = vpop.f32.mrb[0].mxu0
        %v462 = vadd.f32 0.0, %v461
        %v463 = vpop.f32.mrb[0].mxu0
        %v464 = vadd.f32 0.0, %v463
        %v465 = vpop.f32.mrb[0].mxu0
        %v466 = vadd.f32 0.0, %v465
        %467 = vdwg.mxu0
        %v468 = vld [vmem:[%s185] sm:$0xff]
        %v469 = vld [vmem:[%s185 + $0x8] sm:$0xff]
        %v470 = vld [vmem:[%s185 + $0x10] sm:$0xff]
        %v471 = vld [vmem:[%s185 + $0x18] sm:$0xff]
        %v472 = vld [vmem:[%s185 + $0x20] sm:$0xff]
        %v473 = vld [vmem:[%s185 + $0x28] sm:$0xff]
        %v474 = vld [vmem:[%s185 + $0x30] sm:$0xff]
        %v475 = vld [vmem:[%s185 + $0x38] sm:$0xff]
        %v476 = vld [vmem:[%s185 + $0x40] sm:$0xff]
        %v477 = vld [vmem:[%s185 + $0x48] sm:$0xff]
        %v478 = vld [vmem:[%s185 + $0x50] sm:$0xff]
        %v479 = vld [vmem:[%s185 + $0x58] sm:$0xff]
        %v480 = vld [vmem:[%s185 + $0x60] sm:$0xff]
        %v481 = vld [vmem:[%s185 + $0x68] sm:$0xff]
        %v482 = vld [vmem:[%s185 + $0x70] sm:$0xff]
        %v483 = vld [vmem:[%s185 + $0x78] sm:$0xff]
        %485 = vset.pattern.permute.xlu0 0
        %486 = vperm.xlu0 %485, %v468
        %v487 = vpop.permute.xlu0 %486
        %490 = vset.pattern.permute.xlu0 0
        %491 = vperm.xlu0 %490, %v469
        %v492 = vpop.permute.xlu0 %491
        %495 = vset.pattern.permute.xlu0 0
        %496 = vperm.xlu0 %495, %v470
        %v497 = vpop.permute.xlu0 %496
        %500 = vset.pattern.permute.xlu0 0
        %501 = vperm.xlu0 %500, %v471
        %v502 = vpop.permute.xlu0 %501
        %505 = vset.pattern.permute.xlu0 0
        %506 = vperm.xlu0 %505, %v472
        %v507 = vpop.permute.xlu0 %506
        %510 = vset.pattern.permute.xlu0 0
        %511 = vperm.xlu0 %510, %v473
        %v512 = vpop.permute.xlu0 %511
        %515 = vset.pattern.permute.xlu0 0
        %516 = vperm.xlu0 %515, %v474
        %v517 = vpop.permute.xlu0 %516
        %520 = vset.pattern.permute.xlu0 0
        %521 = vperm.xlu0 %520, %v475
        %v522 = vpop.permute.xlu0 %521
        %525 = vset.pattern.permute.xlu0 0
        %526 = vperm.xlu0 %525, %v476
        %v527 = vpop.permute.xlu0 %526
        %530 = vset.pattern.permute.xlu0 0
        %531 = vperm.xlu0 %530, %v477
        %v532 = vpop.permute.xlu0 %531
        %535 = vset.pattern.permute.xlu0 0
        %536 = vperm.xlu0 %535, %v478
        %v537 = vpop.permute.xlu0 %536
        %540 = vset.pattern.permute.xlu0 0
        %541 = vperm.xlu0 %540, %v479
        %v542 = vpop.permute.xlu0 %541
        %545 = vset.pattern.permute.xlu0 0
        %546 = vperm.xlu0 %545, %v480
        %v547 = vpop.permute.xlu0 %546
        %550 = vset.pattern.permute.xlu0 0
        %551 = vperm.xlu0 %550, %v481
        %v552 = vpop.permute.xlu0 %551
        %555 = vset.pattern.permute.xlu0 0
        %556 = vperm.xlu0 %555, %v482
        %v557 = vpop.permute.xlu0 %556
        %560 = vset.pattern.permute.xlu0 0
        %561 = vperm.xlu0 %560, %v483
        %v562 = vpop.permute.xlu0 %561
        %v564 = vmul.f32 %v487, %v390
        %v565 = vmul.f32 %v492, %v394
        %v566 = vmul.f32 %v497, %v400
        %v567 = vmul.f32 %v502, %v404
        %v568 = vmul.f32 %v507, %v410
        %v569 = vmul.f32 %v512, %v414
        %v570 = vmul.f32 %v517, %v420
        %v571 = vmul.f32 %v522, %v424
        %v572 = vmul.f32 %v527, %v430
        %v573 = vmul.f32 %v532, %v434
        %v574 = vmul.f32 %v537, %v440
        %v575 = vmul.f32 %v542, %v444
        %v576 = vmul.f32 %v547, %v450
        %v577 = vmul.f32 %v552, %v454
        %v578 = vmul.f32 %v557, %v460
        %v579 = vmul.f32 %v562, %v464
        %580 = vset.pattern.permute.xlu0 1
        %581 = vperm.xlu0 %580, %v468
        %v582 = vpop.permute.xlu0 %581
        %584 = vset.pattern.permute.xlu0 1
        %585 = vperm.xlu0 %584, %v469
        %v586 = vpop.permute.xlu0 %585
        %588 = vset.pattern.permute.xlu0 1
        %589 = vperm.xlu0 %588, %v470
        %v590 = vpop.permute.xlu0 %589
        %592 = vset.pattern.permute.xlu0 1
        %593 = vperm.xlu0 %592, %v471
        %v594 = vpop.permute.xlu0 %593
        %596 = vset.pattern.permute.xlu0 1
        %597 = vperm.xlu0 %596, %v472
        %v598 = vpop.permute.xlu0 %597
        %600 = vset.pattern.permute.xlu0 1
        %601 = vperm.xlu0 %600, %v473
        %v602 = vpop.permute.xlu0 %601
        %604 = vset.pattern.permute.xlu0 1
        %605 = vperm.xlu0 %604, %v474
        %v606 = vpop.permute.xlu0 %605
        %608 = vset.pattern.permute.xlu0 1
        %609 = vperm.xlu0 %608, %v475
        %v610 = vpop.permute.xlu0 %609
        %612 = vset.pattern.permute.xlu0 1
        %613 = vperm.xlu0 %612, %v476
        %v614 = vpop.permute.xlu0 %613
        %616 = vset.pattern.permute.xlu0 1
        %617 = vperm.xlu0 %616, %v477
        %v618 = vpop.permute.xlu0 %617
        %620 = vset.pattern.permute.xlu0 1
        %621 = vperm.xlu0 %620, %v478
        %v622 = vpop.permute.xlu0 %621
        %624 = vset.pattern.permute.xlu0 1
        %625 = vperm.xlu0 %624, %v479
        %v626 = vpop.permute.xlu0 %625
        %628 = vset.pattern.permute.xlu0 1
        %629 = vperm.xlu0 %628, %v480
        %v630 = vpop.permute.xlu0 %629
        %632 = vset.pattern.permute.xlu0 1
        %633 = vperm.xlu0 %632, %v481
        %v634 = vpop.permute.xlu0 %633
        %636 = vset.pattern.permute.xlu0 1
        %637 = vperm.xlu0 %636, %v482
        %v638 = vpop.permute.xlu0 %637
        %640 = vset.pattern.permute.xlu0 1
        %641 = vperm.xlu0 %640, %v483
        %v642 = vpop.permute.xlu0 %641
        %v644 = vmul.f32 %v582, %v392
        %v645 = vmul.f32 %v586, %v396
        %v646 = vmul.f32 %v590, %v402
        %v647 = vmul.f32 %v594, %v406
        %v648 = vmul.f32 %v598, %v412
        %v649 = vmul.f32 %v602, %v416
        %v650 = vmul.f32 %v606, %v422
        %v651 = vmul.f32 %v610, %v426
        %v652 = vmul.f32 %v614, %v432
        %v653 = vmul.f32 %v618, %v436
        %v654 = vmul.f32 %v622, %v442
        %v655 = vmul.f32 %v626, %v446
        %v656 = vmul.f32 %v630, %v452
        %v657 = vmul.f32 %v634, %v456
        %v658 = vmul.f32 %v638, %v462
        %v659 = vmul.f32 %v642, %v466
        %v660 = vadd.f32 %v564, %v644
        %v661 = vadd.f32 %v565, %v645
        %v662 = vadd.f32 %v566, %v646
        %v663 = vadd.f32 %v567, %v647
        %v664 = vadd.f32 %v568, %v648
        %v665 = vadd.f32 %v569, %v649
        %v666 = vadd.f32 %v570, %v650
        %v667 = vadd.f32 %v571, %v651
        %v668 = vadd.f32 %v572, %v652
        %v669 = vadd.f32 %v573, %v653
        %v670 = vadd.f32 %v574, %v654
        %v671 = vadd.f32 %v575, %v655
        %v672 = vadd.f32 %v576, %v656
        %v673 = vadd.f32 %v577, %v657
        %v674 = vadd.f32 %v578, %v658
        %v675 = vadd.f32 %v579, %v659
        %v676 = vpack.c.bf16 %v661, %v660
        %v677 = vpack.c.bf16 %v663, %v662
        %v678 = vpack.c.bf16 %v665, %v664
        %v679 = vpack.c.bf16 %v667, %v666
        %v680 = vpack.c.bf16 %v669, %v668
        %v681 = vpack.c.bf16 %v671, %v670
        %v682 = vpack.c.bf16 %v673, %v672
        %v683 = vpack.c.bf16 %v675, %v674
        %v692 = vunpack.c.l.b16 %v676
        %v693 = vunpack.c.h.b16 %v676
        %v694 = vunpack.c.l.b16 %v677
        %v695 = vunpack.c.h.b16 %v677
        %v696 = vunpack.c.l.b16 %v678
        %v697 = vunpack.c.h.b16 %v678
        %v698 = vunpack.c.l.b16 %v679
        %v699 = vunpack.c.h.b16 %v679
        %v700 = vunpack.c.l.b16 %v680
        %v701 = vunpack.c.h.b16 %v680
        %v702 = vunpack.c.l.b16 %v681
        %v703 = vunpack.c.h.b16 %v681
        %v704 = vunpack.c.l.b16 %v682
        %v705 = vunpack.c.h.b16 %v682
        %v706 = vunpack.c.l.b16 %v683
        %v707 = vunpack.c.h.b16 %v683
        %v708 = vpack.c.b16 %v692, %v692
        %v709 = vpack.c.b16 %v693, %v693
        %v710 = vpack.c.b16 %v694, %v694
        %v711 = vpack.c.b16 %v695, %v695
        %v712 = vpack.c.b16 %v696, %v696
        %v713 = vpack.c.b16 %v697, %v697
        %v714 = vpack.c.b16 %v698, %v698
        %v715 = vpack.c.b16 %v699, %v699
        %v716 = vpack.c.b16 %v700, %v700
        %v717 = vpack.c.b16 %v701, %v701
        %v718 = vpack.c.b16 %v702, %v702
        %v719 = vpack.c.b16 %v703, %v703
        %v720 = vpack.c.b16 %v704, %v704
        %v721 = vpack.c.b16 %v705, %v705
        %v722 = vpack.c.b16 %v706, %v706
        %v723 = vpack.c.b16 %v707, %v707
        %740 = vst [vmem:[%s180] sm:$0xf] %v708
        %741 = vst [vmem:[%s180 + $0x4] sm:$0xf] %v709
        %742 = vst [vmem:[%s180 + $0x8] sm:$0xf] %v710
        %743 = vst [vmem:[%s180 + $0xc] sm:$0xf] %v711
        %744 = vst [vmem:[%s180 + $0x10] sm:$0xf] %v712
        %745 = vst [vmem:[%s180 + $0x14] sm:$0xf] %v713
        %746 = vst [vmem:[%s180 + $0x18] sm:$0xf] %v714
        %747 = vst [vmem:[%s180 + $0x1c] sm:$0xf] %v715
        %748 = vst [vmem:[%s180 + $0x20] sm:$0xf] %v716
        %749 = vst [vmem:[%s180 + $0x24] sm:$0xf] %v717
        %750 = vst [vmem:[%s180 + $0x28] sm:$0xf] %v718
        %751 = vst [vmem:[%s180 + $0x2c] sm:$0xf] %v719
        %752 = vst [vmem:[%s180 + $0x30] sm:$0xf] %v720
        %753 = vst [vmem:[%s180 + $0x34] sm:$0xf] %v721
        %754 = vst [vmem:[%s180 + $0x38] sm:$0xf] %v722
        %755 = vst [vmem:[%s180 + $0x3c] sm:$0xf] %v723
        %s756 = sand.u32 %s98, 1
        %s757 = scalar_lea.sflag [#allocation3], %s756
        %s758 = sand.u32 %s98, 1
        %s759 = smul.addr %s758, 64
        %s760 = scalar_lea.vmem [#allocation2], %s759
        // Predicated region
        $region33: #{tpu_custom_call.1} parent=31 // pred_check
          %p761 = pneg %p108
        $region34: #{tpu_custom_call.1} parent=31 // pred_check_branch
          %763 = sbr.rel (%p761) target = $region36
        $region35: #{tpu_custom_call.1} parent=31 // pred_region
          %s764 = smul.u32 16, %s17
          %s766 = ssub.s32 1024, 1024
          %767 = vsyncadd %s757, %s766
          %s768 = smul.addr %s764, 64
          %s769 = scalar_lea.hbm %s3, %s768
          %s770 = sshll.u32 %s760, 4
          %s771 = int_to_ptr.vmem [resolvable:$true] %s770
          %776 = dma.vmem_to_hbm [thread:$0]  %s771, 1024, %s769, %s757, 64, 64, 4
        $region36: #{tpu_custom_call.1} parent=31 // pred_fallthru
          _
      $region32: #{tpu_custom_call.1} parent=5 // pred_fallthru
        _
      %p777 = scmp.le.s32.totalorder 2, %s12
      // Predicated region
      $region37: #{tpu_custom_call.1} parent=5 // pred_check
        %p778 = pneg %p777
      $region38: #{tpu_custom_call.1} parent=5 // pred_check_branch
        %780 = sbr.rel (%p778) target = $region40
      $region39: #{tpu_custom_call.1} parent=5 // pred_region
        %s781 = ssub.s32 %s12, 2
        // Predicated region
        $region41: #{tpu_custom_call.1} parent=39 // pred_check
          %p782 = pneg %p114
        $region42: #{tpu_custom_call.1} parent=39 // pred_check_branch
          %784 = sbr.rel (%p782) target = $region44
        $region43: #{tpu_custom_call.1} parent=39 // pred_region
          %s785 = sand.u32 %s99, 1
          %s786 = scalar_lea.sflag [#allocation3], %s785
          %s787 = sand.u32 %s99, 1
          %s788 = smul.addr %s787, 64
          %s789 = scalar_lea.vmem [#allocation2], %s788
          %790 = dma.done %s786, 1024
        $region44: #{tpu_custom_call.1} parent=39 // pred_fallthru
          _
      $region40: #{tpu_custom_call.1} parent=5 // pred_fallthru
        _
    $region6: #{tpu_custom_call.1} parent=1 // loop_footer
      %s16 = sadd.s32 1, %s12
    $region7: #{tpu_custom_call.1} parent=1 // loop_footer_branch
      %11 = sbr.rel target = $region3
    $region8: #{tpu_custom_call.1} parent=1 // loop_exit
      _
    %791 = vsyncpa [#allocation3], 1
    %s792 = scalar_lea.sflag [#allocation3], 1
    %793 = vsyncpa %s792, 1

</llo_original>
